<compile_context>
chip_gen: v7x
topology: tpu7x:2x2x1
jax: 0.10.0
libtpu: 0.0.40
codegen_flags: <defaults>
</compile_context>

<pallas_src>
import math

import jax
import jax.numpy as jnp
from jax.experimental import pallas as pl
from jax.experimental.pallas import tpu as pltpu


# --------------------------------------------------------------------------- #
# Kernel: fused generator (concat + 3 Linear + 2 residual ReLU + sigmoid)
# --------------------------------------------------------------------------- #
def _gan_generator_kernel(z_ref, s_ref, w1_ref, b1_ref, w2_ref, b2_ref,
                          w3_ref, b3_ref, out_ref):
    """One batch tile of the MedGAN generator, fully fused in VMEM.

    z_ref, s_ref : (TB, E)   per-grid-step batch tiles
    w*_ref       : pre-transposed weights (in, out), resident across grid steps
    b*_ref       : (1, out) bias rows (f32)
    out_ref      : (TB, V)   lane-dense output tile
    """
    # inputs = concat([z, s], -1) assembled in-register (single cheap XLU op,
    # no HBM materialization of the concatenated input in the wrapper).
    z = z_ref[...].astype(jnp.float32)
    s = s_ref[...].astype(jnp.float32)
    x = jnp.concatenate([z, s], axis=-1)                           # (TB, 2E) f32

    wdt = w1_ref.dtype  # f32 or bf16; cast only at the MXU inputs

    h1 = jnp.dot(x.astype(wdt), w1_ref[...],
                 preferred_element_type=jnp.float32) + b1_ref[...]
    t1 = jnp.maximum(h1, 0.0) + x                                  # residual 1 (f32 VPU)

    h2 = jnp.dot(t1.astype(wdt), w2_ref[...],
                 preferred_element_type=jnp.float32) + b2_ref[...]
    t2 = jnp.maximum(h2, 0.0) + t1                                 # residual 2

    logits = jnp.dot(t2.astype(wdt), w3_ref[...],
                     preferred_element_type=jnp.float32) + b3_ref[...]

    # sigmoid(x) = 1 / (1 + exp(-x)); exp and the approximate reciprocal both
    # run on the EUP slot, keeping the VALU free.
    out_ref[...] = pl.reciprocal(1.0 + jnp.exp(-logits),
                                 approx=True).astype(out_ref.dtype)


# --------------------------------------------------------------------------- #
# Jitted wrappers: pad -> pallas_call (batch grid) -> slice, all one dispatch
# --------------------------------------------------------------------------- #
@jax.jit
def _gan_infer(w1t, b1, w2t, b2, w3t, b3, z, s):
    B, E = s.shape
    V = w3t.shape[1]
    z = z.astype(jnp.float32)
    s = s.astype(jnp.float32)

    # Batch tile: multiple of 8 (dense sublanes); grow to 128 rows to fill
    # MXU rows before adding grid steps. Per-block VMEM stays tiny everywhere
    # (v7x's 64 MiB included).
    Bp8 = max(8, ((B + 7) // 8) * 8)
    TB = Bp8 if Bp8 <= 128 else 128
    Bp = ((B + TB - 1) // TB) * TB
    if Bp != B:
        z = jnp.pad(z, ((0, Bp - B), (0, 0)))
        s = jnp.pad(s, ((0, Bp - B), (0, 0)))

    vmem = pltpu.MemorySpace.VMEM
    batch_map = lambda i: (i, 0)     # batch-tiled operands
    resident = lambda i: (0, 0)      # weights/biases: same block every step ->
                                     # DMA'd once, stay VMEM-resident

    out = pl.pallas_call(
        _gan_generator_kernel,
        out_shape=jax.ShapeDtypeStruct((Bp, V), jnp.float32),
        grid=(Bp // TB,),
        in_specs=[
            pl.BlockSpec((TB, E), batch_map, memory_space=vmem),   # z
            pl.BlockSpec((TB, E), batch_map, memory_space=vmem),   # s
            pl.BlockSpec(w1t.shape, resident, memory_space=vmem),
            pl.BlockSpec(b1.shape, resident, memory_space=vmem),
            pl.BlockSpec(w2t.shape, resident, memory_space=vmem),
            pl.BlockSpec(b2.shape, resident, memory_space=vmem),
            pl.BlockSpec(w3t.shape, resident, memory_space=vmem),
            pl.BlockSpec(b3.shape, resident, memory_space=vmem),
        ],
        out_specs=pl.BlockSpec((TB, V), batch_map, memory_space=vmem),
        compiler_params=pltpu.CompilerParams(
            # batch axis is independent work -> shards across v7x's 2 TCs
            dimension_semantics=("parallel",)),
    )(z, s, w1t, b1, w2t, b2, w3t, b3)

    return out[:B]


@jax.jit
def _gan_forward(w1t, b1, w2t, b2, w3t, b3, key, s):
    # torch.randn(...) draws f32 noise; drawn inside the jit so the noise,
    # pad, pallas_call and slice compile into a single dispatch.
    z = jax.random.normal(key, s.shape, dtype=jnp.float32)
    return _gan_infer(w1t, b1, w2t, b2, w3t, b3, z, s)


# --------------------------------------------------------------------------- #
# Module wrapper
# --------------------------------------------------------------------------- #
class PallasGAN:
    """Pallas equivalent of GAN(emb_size, total_vocab_size, gen_dims, dis_dims).

    Weights are stored pre-transposed (in, out) and biases as (1, out) rows so
    the hot path contains no layout ops. param_dtype=bf16 halves weight DMA /
    VMEM and feeds the v6e/v7x MXU at full rate (activations stay f32).
    """

    def __init__(self, emb_size, total_vocab_size, gen_dims, dis_dims, key,
                 param_dtype=jnp.float32):
        assert gen_dims[0] == 2 * emb_size and gen_dims[1] == 2 * emb_size, \
            "residual adds in infer_generator require gen_dims == (2*emb_size, 2*emb_size)"
        self.emb_size = emb_size
        self.total_vocab_size = total_vocab_size

        def linear_init(key, in_f, out_f, dtype):
            # PyTorch nn.Linear default init: U(-1/sqrt(in_f), 1/sqrt(in_f)).
            k = 1.0 / math.sqrt(in_f)
            kw, kb = jax.random.split(key)
            w = jax.random.uniform(kw, (out_f, in_f), jnp.float32, -k, k)
            b = jax.random.uniform(kb, (out_f,), jnp.float32, -k, k)
            # pre-transposed weight (in_f, out_f); bias kept f32 (VPU-friendly).
            return jnp.transpose(w).astype(dtype), b.reshape(1, out_f)

        k1, k2, k3, k4, k5 = jax.random.split(key, 5)
        # generator
        self.w1t, self.b1 = linear_init(k1, 2 * emb_size, gen_dims[0], param_dtype)
        self.w2t, self.b2 = linear_init(k2, gen_dims[0], gen_dims[1], param_dtype)
        self.w3t, self.b3 = linear_init(k3, gen_dims[1], total_vocab_size, param_dtype)
        # discriminator params kept for parity with the module (not used in forward)
        # TODO(synk): infer_discriminator is not kernelized (not part of forward()).
        self.dw1t, self.db1 = linear_init(k4, total_vocab_size, dis_dims[0], param_dtype)
        self.dw2t, self.db2 = linear_init(k5, dis_dims[0], 1, param_dtype)

    def __call__(self, s, noise_key):
        return _gan_forward(self.w1t, self.b1, self.w2t, self.b2,
                            self.w3t, self.b3, noise_key, s)

    def infer_generator(self, s, z):
        return _gan_infer(self.w1t, self.b1, self.w2t, self.b2,
                          self.w3t, self.b3, z, s)


# ---------------- pure-JAX reference (for correctness check) ---------------- #
def _gan_ref(model, s, z):
    x = jnp.concatenate([z, s], axis=-1).astype(jnp.float32)
    w1 = model.w1t.astype(jnp.float32)
    w2 = model.w2t.astype(jnp.float32)
    w3 = model.w3t.astype(jnp.float32)
    h1 = jax.nn.relu(x @ w1 + model.b1)
    t1 = h1 + x
    h2 = jax.nn.relu(t1 @ w2 + model.b2)
    t2 = h2 + t1
    return jax.nn.sigmoid(t2 @ w3 + model.b3)


if __name__ == "__main__":
    emb_size = 32
    gen_dims = (64, 64)          # == (2*emb_size, 2*emb_size) so residuals are valid
    dis_dims = (64, 32)
    total_vocab_size = 128

    key = jax.random.PRNGKey(0)
    k_params, k_s, k_z, k_s2, k_z2, k_noise = jax.random.split(key, 6)

    model = PallasGAN(emb_size, total_vocab_size, gen_dims, dis_dims, k_params)

    # Deterministic check of the generator path (fixed z), tiny batch B=2.
    # Tolerance is bounded by the EUP approximate reciprocal in the sigmoid;
    # everything else in this path is exact f32.
    s = jax.random.normal(k_s, (2, emb_size), dtype=jnp.float32)
    z = jax.random.normal(k_z, (2, emb_size), dtype=jnp.float32)
    out = jax.block_until_ready(model.infer_generator(s, z))
    assert out.shape == (2, total_vocab_size)
    ref = _gan_ref(model, s, z)
    assert jnp.allclose(out, ref, atol=2e-3, rtol=2e-3)

    # Larger batch exercising the batch grid (3 grid steps, weights stay
    # VMEM-resident across steps, batch padded 300 -> 384).
    s2 = jax.random.normal(k_s2, (300, emb_size), dtype=jnp.float32)
    z2 = jax.random.normal(k_z2, (300, emb_size), dtype=jnp.float32)
    out2 = jax.block_until_ready(model.infer_generator(s2, z2))
    assert out2.shape == (300, total_vocab_size)
    ref2 = _gan_ref(model, s2, z2)
    assert jnp.allclose(out2, ref2, atol=2e-3, rtol=2e-3)

    # forward() path: random z drawn inside the jitted wrapper (like torch.randn).
    out_fwd = jax.block_until_ready(model(s, k_noise))
    assert out_fwd.shape == (2, total_vocab_size)

    # bf16-weight variant (v6e/v7x MXU-friendly); activations/residuals/sigmoid
    # stay f32, accumulation is f32 -> only the dot inputs are bf16-rounded.
    model_bf16 = PallasGAN(emb_size, total_vocab_size, gen_dims, dis_dims,
                           k_params, param_dtype=jnp.bfloat16)
    out_bf16 = jax.block_until_ready(model_bf16.infer_generator(s, z))
    assert out_bf16.shape == (2, total_vocab_size)
    ref_bf16 = _gan_ref(model_bf16, s, z)
    assert jnp.allclose(out_bf16, ref_bf16, atol=5e-2, rtol=5e-2)

    print("KERNEL_OK")
</pallas_src>

<mosaic_0001>
module attributes {stable_mosaic.version = 11 : i64} {
  func.func @_gan_generator_kernel(%arg0: i32, %arg1: memref<8x32xf32, #tpu.memory_space<vmem>>, %arg2: memref<8x32xf32, #tpu.memory_space<vmem>>, %arg3: memref<64x64xf32, #tpu.memory_space<vmem>>, %arg4: memref<1x64xf32, #tpu.memory_space<vmem>>, %arg5: memref<64x64xf32, #tpu.memory_space<vmem>>, %arg6: memref<1x64xf32, #tpu.memory_space<vmem>>, %arg7: memref<64x128xf32, #tpu.memory_space<vmem>>, %arg8: memref<1x128xf32, #tpu.memory_space<vmem>>, %arg9: memref<8x128xf32, #tpu.memory_space<vmem>>) attributes {dimension_semantics = [#tpu.dimension_semantics<parallel>], iteration_bounds = array<i64: 1>, scalar_prefetch = 0 : i64, scratch_operands = 0 : i64, tpu.core_type = #tpu.core_type<tc>, window_params = [{transform_indices = @transform_0, window_bounds = array<i64: 8, 32>}, {transform_indices = @transform_1, window_bounds = array<i64: 8, 32>}, {pipeline_mode = #tpu.pipeline_mode<synchronous>, transform_indices = @transform_2, window_bounds = array<i64: 64, 64>}, {pipeline_mode = #tpu.pipeline_mode<synchronous>, transform_indices = @transform_3, window_bounds = array<i64: 1, 64>}, {pipeline_mode = #tpu.pipeline_mode<synchronous>, transform_indices = @transform_4, window_bounds = array<i64: 64, 64>}, {pipeline_mode = #tpu.pipeline_mode<synchronous>, transform_indices = @transform_5, window_bounds = array<i64: 1, 64>}, {pipeline_mode = #tpu.pipeline_mode<synchronous>, transform_indices = @transform_6, window_bounds = array<i64: 64, 128>}, {pipeline_mode = #tpu.pipeline_mode<synchronous>, transform_indices = @transform_7, window_bounds = array<i64: 1, 128>}, {transform_indices = @transform_8, window_bounds = array<i64: 8, 128>}]} {
    %c0 = arith.constant 0 : index
    %c0_0 = arith.constant 0 : index
    %0 = vector.load %arg1[%c0, %c0_0] : memref<8x32xf32, #tpu.memory_space<vmem>>, vector<8x32xf32>
    %c0_1 = arith.constant 0 : index
    %c0_2 = arith.constant 0 : index
    %1 = vector.load %arg2[%c0_1, %c0_2] : memref<8x32xf32, #tpu.memory_space<vmem>>, vector<8x32xf32>
    %2 = tpu.concatenate %0, %1 in 1 : vector<8x32xf32>, vector<8x32xf32> -> vector<8x64xf32>
    %c0_3 = arith.constant 0 : index
    %c0_4 = arith.constant 0 : index
    %3 = vector.load %arg3[%c0_3, %c0_4] : memref<64x64xf32, #tpu.memory_space<vmem>>, vector<64x64xf32>
    %cst = arith.constant dense<0.000000e+00> : vector<8x64xf32>
    %4 = tpu.matmul %2, %3, %cst {dimension_numbers = #tpu.dot_dimension_numbers<[1], [0], [0], [1], [0, 0, 1, 1], [], []>} : vector<8x64xf32>, vector<64x64xf32>, vector<8x64xf32> -> vector<8x64xf32>
    %c0_5 = arith.constant 0 : index
    %c0_6 = arith.constant 0 : index
    %5 = vector.load %arg4[%c0_5, %c0_6] : memref<1x64xf32, #tpu.memory_space<vmem>>, vector<1x64xf32>
    %6 = vector.broadcast %5 : vector<1x64xf32> to vector<8x64xf32>
    %7 = arith.addf %4, %6 : vector<8x64xf32>
    %cst_7 = arith.constant 0.000000e+00 : f32
    %8 = vector.broadcast %cst_7 : f32 to vector<8x64xf32>
    %9 = arith.maximumf %7, %8 : vector<8x64xf32>
    %10 = arith.addf %9, %2 : vector<8x64xf32>
    %c0_8 = arith.constant 0 : index
    %c0_9 = arith.constant 0 : index
    %11 = vector.load %arg5[%c0_8, %c0_9] : memref<64x64xf32, #tpu.memory_space<vmem>>, vector<64x64xf32>
    %cst_10 = arith.constant dense<0.000000e+00> : vector<8x64xf32>
    %12 = tpu.matmul %10, %11, %cst_10 {dimension_numbers = #tpu.dot_dimension_numbers<[1], [0], [0], [1], [0, 0, 1, 1], [], []>} : vector<8x64xf32>, vector<64x64xf32>, vector<8x64xf32> -> vector<8x64xf32>
    %c0_11 = arith.constant 0 : index
    %c0_12 = arith.constant 0 : index
    %13 = vector.load %arg6[%c0_11, %c0_12] : memref<1x64xf32, #tpu.memory_space<vmem>>, vector<1x64xf32>
    %14 = vector.broadcast %13 : vector<1x64xf32> to vector<8x64xf32>
    %15 = arith.addf %12, %14 : vector<8x64xf32>
    %cst_13 = arith.constant 0.000000e+00 : f32
    %16 = vector.broadcast %cst_13 : f32 to vector<8x64xf32>
    %17 = arith.maximumf %15, %16 : vector<8x64xf32>
    %18 = arith.addf %17, %10 : vector<8x64xf32>
    %c0_14 = arith.constant 0 : index
    %c0_15 = arith.constant 0 : index
    %19 = vector.load %arg7[%c0_14, %c0_15] : memref<64x128xf32, #tpu.memory_space<vmem>>, vector<64x128xf32>
    %cst_16 = arith.constant dense<0.000000e+00> : vector<8x128xf32>
    %20 = tpu.matmul %18, %19, %cst_16 {dimension_numbers = #tpu.dot_dimension_numbers<[1], [0], [0], [1], [0, 0, 1, 1], [], []>} : vector<8x64xf32>, vector<64x128xf32>, vector<8x128xf32> -> vector<8x128xf32>
    %c0_17 = arith.constant 0 : index
    %c0_18 = arith.constant 0 : index
    %21 = vector.load %arg8[%c0_17, %c0_18] : memref<1x128xf32, #tpu.memory_space<vmem>>, vector<1x128xf32>
    %22 = vector.broadcast %21 : vector<1x128xf32> to vector<8x128xf32>
    %23 = arith.addf %20, %22 : vector<8x128xf32>
    %cst_19 = arith.constant 0.000000e+00 : f32
    %24 = vector.broadcast %cst_19 : f32 to vector<8x128xf32>
    %25 = arith.subf %24, %23 : vector<8x128xf32>
    %26 = math.exp %25 : vector<8x128xf32>
    %cst_20 = arith.constant 1.000000e+00 : f32
    %27 = vector.broadcast %cst_20 : f32 to vector<8x128xf32>
    %28 = arith.addf %27, %26 : vector<8x128xf32>
    %29 = tpu.reciprocal %28 {approx = true} : vector<8x128xf32> -> vector<8x128xf32>
    %c0_21 = arith.constant 0 : index
    %c0_22 = arith.constant 0 : index
    %30 = vector.load %arg9[%c0_21, %c0_22] : memref<8x128xf32, #tpu.memory_space<vmem>>, vector<8x128xf32>
    tpu.vector_store %arg9[%c0_21, %c0_22], %29 {strides = array<i32>} : memref<8x128xf32, #tpu.memory_space<vmem>>, vector<8x128xf32>,
    return
  }
  func.func @transform_0(%arg0: i32) -> (i32, i32) {
    %c0_i32 = arith.constant 0 : i32
    %c0_i32_0 = arith.constant 0 : i32
    return %arg0, %c0_i32 : i32, i32
  }
  func.func @transform_1(%arg0: i32) -> (i32, i32) {
    %c0_i32 = arith.constant 0 : i32
    %c0_i32_0 = arith.constant 0 : i32
    return %arg0, %c0_i32 : i32, i32
  }
  func.func @transform_2(%arg0: i32) -> (i32, i32) {
    %c0_i32 = arith.constant 0 : i32
    %c0_i32_0 = arith.constant 0 : i32
    %c0_i32_1 = arith.constant 0 : i32
    return %c0_i32, %c0_i32_0 : i32, i32
  }
  func.func @transform_3(%arg0: i32) -> (i32, i32) {
    %c0_i32 = arith.constant 0 : i32
    %c0_i32_0 = arith.constant 0 : i32
    %c0_i32_1 = arith.constant 0 : i32
    return %c0_i32, %c0_i32_0 : i32, i32
  }
  func.func @transform_4(%arg0: i32) -> (i32, i32) {
    %c0_i32 = arith.constant 0 : i32
    %c0_i32_0 = arith.constant 0 : i32
    %c0_i32_1 = arith.constant 0 : i32
    return %c0_i32, %c0_i32_0 : i32, i32
  }
  func.func @transform_5(%arg0: i32) -> (i32, i32) {
    %c0_i32 = arith.constant 0 : i32
    %c0_i32_0 = arith.constant 0 : i32
    %c0_i32_1 = arith.constant 0 : i32
    return %c0_i32, %c0_i32_0 : i32, i32
  }
  func.func @transform_6(%arg0: i32) -> (i32, i32) {
    %c0_i32 = arith.constant 0 : i32
    %c0_i32_0 = arith.constant 0 : i32
    %c0_i32_1 = arith.constant 0 : i32
    return %c0_i32, %c0_i32_0 : i32, i32
  }
  func.func @transform_7(%arg0: i32) -> (i32, i32) {
    %c0_i32 = arith.constant 0 : i32
    %c0_i32_0 = arith.constant 0 : i32
    %c0_i32_1 = arith.constant 0 : i32
    return %c0_i32, %c0_i32_0 : i32, i32
  }
  func.func @transform_8(%arg0: i32) -> (i32, i32) {
    %c0_i32 = arith.constant 0 : i32
    %c0_i32_0 = arith.constant 0 : i32
    return %arg0, %c0_i32 : i32, i32
  }
}

</mosaic_0001>

<llo_original>
// kernel: _gan_infer.1
$region0: #{_gan_infer.1}
  #allocation0 [shape = 'u32[]', space=smem, size = 0x4, offset = 0x4, fixed_abs, tag = 'smem constant byte address 0x4 - core index']
  #allocation1 [shape = 'u32[144,128]{1,0:T(1,128)}', space=vmem, size = 0x12000, scoped, tag = 'internal scratch']
  %s0 = inlined_call_operand.vmem [shape: f32[8,32], index: 0, kind: input, shape index: {}]
  %s1 = inlined_call_operand.vmem [shape: f32[8,32], index: 1, kind: input, shape index: {}]
  %s2 = inlined_call_operand.hbm [shape: f32[64,64], index: 2, kind: input, shape index: {}]
  %s3 = inlined_call_operand.vmem [shape: f32[1,64], index: 3, kind: input, shape index: {}]
  %s4 = inlined_call_operand.hbm [shape: f32[64,64], index: 4, kind: input, shape index: {}]
  %s5 = inlined_call_operand.vmem [shape: f32[1,64], index: 5, kind: input, shape index: {}]
  %s6 = inlined_call_operand.hbm [shape: f32[64,128], index: 6, kind: input, shape index: {}]
  %s7 = inlined_call_operand.vmem [shape: f32[1,128], index: 7, kind: input, shape index: {}]
  %s8 = inlined_call_operand.vmem [shape: f32[8,128], index: 8, kind: output, shape index: {}]
  %s9 = sld [smem:[#allocation0]]
  $region54: #{_gan_infer.1} parent=0
    _
  %s11 = ssub.s32 1, %s9
  %s12 = scalar_select 0, %s11, %s9
  $region1: #{_gan_infer.1} parent=0
    #allocation2 [shape = 'u8[32768]{0}', space=vmem, size = 0x8000, scoped, tag = 'input window, operand 2, single buffered']
    #allocation3 [shape = 's32[1]{0}', space=sflag, size = 0x4, scoped, tag = 'scoped memory for _gan_infer.1']
    #allocation4 [shape = 'u8[32768]{0}', space=vmem, size = 0x8000, scoped, tag = 'input window, operand 4, single buffered']
    #allocation5 [shape = 's32[1]{0}', space=sflag, size = 0x4, scoped, tag = 'scoped memory for _gan_infer.1']
    #allocation6 [shape = 'u8[32768]{0}', space=vmem, size = 0x8000, scoped, tag = 'input window, operand 6, single buffered']
    %13 = vsyncpa [#allocation3], 0
    %14 = vsyncpa [#allocation5], 0
    // Predicated region
    $region2: #{_gan_infer.1} parent=1 // pred_check
      _
    $region3: #{_gan_infer.1} parent=1 // pred_check_branch
      %16 = sbr.rel (0) target = $region5
    $region4: #{_gan_infer.1} parent=1 // pred_region
      _
    $region5: #{_gan_infer.1} parent=1 // pred_fallthru
      _
    // Predicated region
    $region6: #{_gan_infer.1} parent=1 // pred_check
      _
    $region7: #{_gan_infer.1} parent=1 // pred_check_branch
      %18 = sbr.rel (0) target = $region9
    $region8: #{_gan_infer.1} parent=1 // pred_region
      _
    $region9: #{_gan_infer.1} parent=1 // pred_fallthru
      _
    // Predicated region
    $region10: #{_gan_infer.1} parent=1 // pred_check
      _
    $region11: #{_gan_infer.1} parent=1 // pred_check_branch
      %20 = sbr.rel (0) target = $region13
    $region12: #{_gan_infer.1} parent=1 // pred_region
      %s22 = ssub.s32 1024, 1024
      %23 = vsyncadd [#allocation3], %s22
      %s24 = sshll.u32 [#allocation2], 4
      %s25 = int_to_ptr.vmem [resolvable:$true] %s24
      %30 = dma.hbm_to_vmem [thread:$0]  %s2, 1024, %s25, [#allocation3], 128, 128, 8
    $region13: #{_gan_infer.1} parent=1 // pred_fallthru
      _
    // Predicated region
    $region14: #{_gan_infer.1} parent=1 // pred_check
      _
    $region15: #{_gan_infer.1} parent=1 // pred_check_branch
      %32 = sbr.rel (0) target = $region17
    $region16: #{_gan_infer.1} parent=1 // pred_region
      _
    $region17: #{_gan_infer.1} parent=1 // pred_fallthru
      _
    // Predicated region
    $region18: #{_gan_infer.1} parent=1 // pred_check
      _
    $region19: #{_gan_infer.1} parent=1 // pred_check_branch
      %34 = sbr.rel (0) target = $region21
    $region20: #{_gan_infer.1} parent=1 // pred_region
      %s36 = ssub.s32 1024, 1024
      %37 = vsyncadd [#allocation5], %s36
      %s38 = sshll.u32 [#allocation4], 4
      %s39 = int_to_ptr.vmem [resolvable:$true] %s38
      %44 = dma.hbm_to_vmem [thread:$0]  %s4, 1024, %s39, [#allocation5], 128, 128, 8
    $region21: #{_gan_infer.1} parent=1 // pred_fallthru
      _
    // Predicated region
    $region22: #{_gan_infer.1} parent=1 // pred_check
      _
    $region23: #{_gan_infer.1} parent=1 // pred_check_branch
      %46 = sbr.rel (0) target = $region25
    $region24: #{_gan_infer.1} parent=1 // pred_region
      _
    $region25: #{_gan_infer.1} parent=1 // pred_fallthru
      _
    // Predicated region
    $region26: #{_gan_infer.1} parent=1 // pred_check
      _
    $region27: #{_gan_infer.1} parent=1 // pred_check_branch
      %48 = sbr.rel (0) target = $region29
    $region28: #{_gan_infer.1} parent=1 // pred_region
      %s50 = ssub.s32 1024, 1024
      %51 = vsyncadd [#allocation5], %s50
      %s52 = sshll.u32 [#allocation6], 4
      %s53 = int_to_ptr.vmem [resolvable:$true] %s52
      %58 = dma.hbm_to_vmem [thread:$0]  %s6, 1024, %s53, [#allocation5], 128, 128, 8
    $region29: #{_gan_infer.1} parent=1 // pred_fallthru
      _
    // Predicated region
    $region30: #{_gan_infer.1} parent=1 // pred_check
      _
    $region31: #{_gan_infer.1} parent=1 // pred_check_branch
      %60 = sbr.rel (0) target = $region33
    $region32: #{_gan_infer.1} parent=1 // pred_region
      _
    $region33: #{_gan_infer.1} parent=1 // pred_fallthru
      _
    // Predicated region
    $region34: #{_gan_infer.1} parent=1 // pred_check
      _
    $region35: #{_gan_infer.1} parent=1 // pred_check_branch
      %62 = sbr.rel (0) target = $region37
    $region36: #{_gan_infer.1} parent=1 // pred_region
      %63 = dma.done [#allocation3], 1024
    $region37: #{_gan_infer.1} parent=1 // pred_fallthru
      _
    // Predicated region
    $region38: #{_gan_infer.1} parent=1 // pred_check
      _
    $region39: #{_gan_infer.1} parent=1 // pred_check_branch
      %65 = sbr.rel (0) target = $region41
    $region40: #{_gan_infer.1} parent=1 // pred_region
      %66 = dma.done [#allocation5], 1024
    $region41: #{_gan_infer.1} parent=1 // pred_fallthru
      _
    // Predicated region
    $region42: #{_gan_infer.1} parent=1 // pred_check
      _
    $region43: #{_gan_infer.1} parent=1 // pred_check_branch
      %68 = sbr.rel (0) target = $region45
    $region44: #{_gan_infer.1} parent=1 // pred_region
      %69 = dma.done [#allocation5], 1024
    $region45: #{_gan_infer.1} parent=1 // pred_fallthru
      _
    %v70 = vld [vmem:[%s0] sm:$0xff]
    %v71 = vld [vmem:[%s1] sm:$0xff]
    %73 = vrot.lane.b32.xlu0 %v71, 32
    %v74 = vpop.permute.xlu0 %73
    %vm76 = vcmask 261120
    %v77 = vsel %vm76, %v70, %v74
    %v78 = vld [vmem:[#allocation2] sm:$0xff]
    %v79 = vld [vmem:[#allocation2 + $0x8] sm:$0xff]
    %v80 = vld [vmem:[#allocation2 + $0x10] sm:$0xff]
    %v81 = vld [vmem:[#allocation2 + $0x18] sm:$0xff]
    %v82 = vld [vmem:[#allocation2 + $0x20] sm:$0xff]
    %v83 = vld [vmem:[#allocation2 + $0x28] sm:$0xff]
    %v84 = vld [vmem:[#allocation2 + $0x30] sm:$0xff]
    %v85 = vld [vmem:[#allocation2 + $0x38] sm:$0xff]
    %v86 = vld [vmem:[%s3] sm:$0x1]
    %v88 = vlaneseq
    %v89 = vshrl.u32 %v88, 7
    %v90 = vsub.s32 0, %v89
    %v91 = vrot.slane %v86, %v90
    %vm93 = vcmask 523264
    %v95 = vsel %vm93, %v77, 0
    %97 = vmatprep.subr.mxu0 0.0
    %98 = vmatpush1.msra.mxu0 %v78
    %99 = vmatprep.subr.mxu0 0.0
    %100 = vmatpush1.msra.mxu0 %v79
    %101 = vmatprep.subr.mxu0 0.0
    %102 = vmatpush1.msra.mxu0 %v80
    %103 = vmatprep.subr.mxu0 0.0
    %104 = vmatpush1.msra.mxu0 %v81
    %105 = vmatprep.subr.mxu0 0.0
    %106 = vmatpush1.msra.mxu0 %v82
    %107 = vmatprep.subr.mxu0 0.0
    %108 = vmatpush1.msra.mxu0 %v83
    %109 = vmatprep.subr.mxu0 0.0
    %110 = vmatpush1.msra.mxu0 %v84
    %111 = vmatprep.subr.mxu0 0.0
    %112 = vmatpush1.msra.mxu0 %v85
    %113 = vmatprep.subr.mxu0 0.0
    %114 = vmatpush1.msra.mxu0 0.0
    %115 = vmatprep.subr.mxu0 0.0
    %116 = vmatpush1.msra.mxu0 0.0
    %117 = vmatprep.subr.mxu0 0.0
    %118 = vmatpush1.msra.mxu0 0.0
    %119 = vmatprep.subr.mxu0 0.0
    %120 = vmatpush1.msra.mxu0 0.0
    %121 = vmatprep.subr.mxu0 0.0
    %122 = vmatpush1.msra.mxu0 0.0
    %123 = vmatprep.subr.mxu0 0.0
    %124 = vmatpush1.msra.mxu0 0.0
    %125 = vmatprep.subr.mxu0 0.0
    %126 = vmatpush1.msra.mxu0 0.0
    %127 = vmatprep.subr.mxu0 0.0
    %128 = vmatpush1.msra.mxu0 0.0
    %129 = vmatprep.subr.mxu0 0.0
    %130 = vmatpush1.msra.mxu0 0.0
    %131 = vmatprep.subr.mxu0 0.0
    %132 = vmatpush1.msra.mxu0 0.0
    %133 = vmatprep.subr.mxu0 0.0
    %134 = vmatpush1.msra.mxu0 0.0
    %135 = vmatprep.subr.mxu0 0.0
    %136 = vmatpush1.msra.mxu0 0.0
    %137 = vmatprep.subr.mxu0 0.0
    %138 = vmatpush1.msra.mxu0 0.0
    %139 = vmatprep.subr.mxu0 0.0
    %140 = vmatpush1.msra.mxu0 0.0
    %141 = vmatprep.subr.mxu0 0.0
    %142 = vmatpush1.msra.mxu0 0.0
    %143 = vmatprep.subr.mxu0 0.0
    %144 = vmatpush1.msra.mxu0 0.0
    %145 = vmatprep.subr.mxu0 0.0
    %146 = vmatpush1.msra.mxu0 0.0
    %147 = vmatprep.subr.mxu0 0.0
    %148 = vmatpush1.msra.mxu0 0.0
    %149 = vmatprep.subr.mxu0 0.0
    %150 = vmatpush1.msra.mxu0 0.0
    %151 = vmatprep.subr.mxu0 0.0
    %152 = vmatpush1.msra.mxu0 0.0
    %153 = vmatprep.subr.mxu0 0.0
    %154 = vmatpush1.msra.mxu0 0.0
    %155 = vmatprep.subr.mxu0 0.0
    %156 = vmatpush1.msra.mxu0 0.0
    %157 = vmatprep.subr.mxu0 0.0
    %158 = vmatpush1.msra.mxu0 0.0
    %159 = vmatprep.subr.mxu0 0.0
    %160 = vmatpush1.msra.mxu0 0.0
    %161 = vmatprep.mubr.f32.mxu0 0.0
    %162 = vmatmul.mubr.f32.gmra.mrb[0].mxu0 %v95
    %v163 = vpop.f32.mrb[0].mxu0
    %v164 = vadd.f32 %v91, %v163
    %v165 = vpop.f32.mrb[0].mxu0
    %166 = vdwg.mxu0
    %v167 = vmax.f32 %v164, 0.0
    %v168 = vadd.f32 %v167, %v77
    %v169 = vld [vmem:[#allocation4] sm:$0xff]
    %v170 = vld [vmem:[#allocation4 + $0x8] sm:$0xff]
    %v171 = vld [vmem:[#allocation4 + $0x10] sm:$0xff]
    %v172 = vld [vmem:[#allocation4 + $0x18] sm:$0xff]
    %v173 = vld [vmem:[#allocation4 + $0x20] sm:$0xff]
    %v174 = vld [vmem:[#allocation4 + $0x28] sm:$0xff]
    %v175 = vld [vmem:[#allocation4 + $0x30] sm:$0xff]
    %v176 = vld [vmem:[#allocation4 + $0x38] sm:$0xff]
    %v177 = vld [vmem:[%s5] sm:$0x1]
    %v179 = vlaneseq
    %v180 = vshrl.u32 %v179, 7
    %v181 = vsub.s32 0, %v180
    %v182 = vrot.slane %v177, %v181
    %v185 = vsel %vm93, %v168, 0
    %187 = vmatprep.subr.mxu0 0.0
    %188 = vmatpush1.msra.mxu0 %v169
    %189 = vmatprep.subr.mxu0 0.0
    %190 = vmatpush1.msra.mxu0 %v170
    %191 = vmatprep.subr.mxu0 0.0
    %192 = vmatpush1.msra.mxu0 %v171
    %193 = vmatprep.subr.mxu0 0.0
    %194 = vmatpush1.msra.mxu0 %v172
    %195 = vmatprep.subr.mxu0 0.0
    %196 = vmatpush1.msra.mxu0 %v173
    %197 = vmatprep.subr.mxu0 0.0
    %198 = vmatpush1.msra.mxu0 %v174
    %199 = vmatprep.subr.mxu0 0.0
    %200 = vmatpush1.msra.mxu0 %v175
    %201 = vmatprep.subr.mxu0 0.0
    %202 = vmatpush1.msra.mxu0 %v176
    %203 = vmatprep.subr.mxu0 0.0
    %204 = vmatpush1.msra.mxu0 0.0
    %205 = vmatprep.subr.mxu0 0.0
    %206 = vmatpush1.msra.mxu0 0.0
    %207 = vmatprep.subr.mxu0 0.0
    %208 = vmatpush1.msra.mxu0 0.0
    %209 = vmatprep.subr.mxu0 0.0
    %210 = vmatpush1.msra.mxu0 0.0
    %211 = vmatprep.subr.mxu0 0.0
    %212 = vmatpush1.msra.mxu0 0.0
    %213 = vmatprep.subr.mxu0 0.0
    %214 = vmatpush1.msra.mxu0 0.0
    %215 = vmatprep.subr.mxu0 0.0
    %216 = vmatpush1.msra.mxu0 0.0
    %217 = vmatprep.subr.mxu0 0.0
    %218 = vmatpush1.msra.mxu0 0.0
    %219 = vmatprep.subr.mxu0 0.0
    %220 = vmatpush1.msra.mxu0 0.0
    %221 = vmatprep.subr.mxu0 0.0
    %222 = vmatpush1.msra.mxu0 0.0
    %223 = vmatprep.subr.mxu0 0.0
    %224 = vmatpush1.msra.mxu0 0.0
    %225 = vmatprep.subr.mxu0 0.0
    %226 = vmatpush1.msra.mxu0 0.0
    %227 = vmatprep.subr.mxu0 0.0
    %228 = vmatpush1.msra.mxu0 0.0
    %229 = vmatprep.subr.mxu0 0.0
    %230 = vmatpush1.msra.mxu0 0.0
    %231 = vmatprep.subr.mxu0 0.0
    %232 = vmatpush1.msra.mxu0 0.0
    %233 = vmatprep.subr.mxu0 0.0
    %234 = vmatpush1.msra.mxu0 0.0
    %235 = vmatprep.subr.mxu0 0.0
    %236 = vmatpush1.msra.mxu0 0.0
    %237 = vmatprep.subr.mxu0 0.0
    %238 = vmatpush1.msra.mxu0 0.0
    %239 = vmatprep.subr.mxu0 0.0
    %240 = vmatpush1.msra.mxu0 0.0
    %241 = vmatprep.subr.mxu0 0.0
    %242 = vmatpush1.msra.mxu0 0.0
    %243 = vmatprep.subr.mxu0 0.0
    %244 = vmatpush1.msra.mxu0 0.0
    %245 = vmatprep.subr.mxu0 0.0
    %246 = vmatpush1.msra.mxu0 0.0
    %247 = vmatprep.subr.mxu0 0.0
    %248 = vmatpush1.msra.mxu0 0.0
    %249 = vmatprep.subr.mxu0 0.0
    %250 = vmatpush1.msra.mxu0 0.0
    %251 = vmatprep.mubr.f32.mxu0 0.0
    %252 = vmatmul.mubr.f32.gmra.mrb[0].mxu0 %v185
    %v253 = vpop.f32.mrb[0].mxu0
    %v254 = vadd.f32 %v182, %v253
    %v255 = vpop.f32.mrb[0].mxu0
    %256 = vdwg.mxu0
    %v257 = vmax.f32 %v254, 0.0
    %v258 = vadd.f32 %v257, %v168
    %v259 = vld [vmem:[#allocation6] sm:$0xff]
    %v260 = vld [vmem:[#allocation6 + $0x8] sm:$0xff]
    %v261 = vld [vmem:[#allocation6 + $0x10] sm:$0xff]
    %v262 = vld [vmem:[#allocation6 + $0x18] sm:$0xff]
    %v263 = vld [vmem:[#allocation6 + $0x20] sm:$0xff]
    %v264 = vld [vmem:[#allocation6 + $0x28] sm:$0xff]
    %v265 = vld [vmem:[#allocation6 + $0x30] sm:$0xff]
    %v266 = vld [vmem:[#allocation6 + $0x38] sm:$0xff]
    %v267 = vld [vmem:[%s7] sm:$0x1]
    %v269 = vlaneseq
    %v270 = vshrl.u32 %v269, 7
    %v271 = vsub.s32 0, %v270
    %v272 = vrot.slane %v267, %v271
    %v275 = vsel %vm93, %v258, 0
    %277 = vmatprep.subr.mxu0 0.0
    %278 = vmatpush1.msra.mxu0 %v259
    %279 = vmatprep.subr.mxu0 0.0
    %280 = vmatpush1.msra.mxu0 %v260
    %281 = vmatprep.subr.mxu0 0.0
    %282 = vmatpush1.msra.mxu0 %v261
    %283 = vmatprep.subr.mxu0 0.0
    %284 = vmatpush1.msra.mxu0 %v262
    %285 = vmatprep.subr.mxu0 0.0
    %286 = vmatpush1.msra.mxu0 %v263
    %287 = vmatprep.subr.mxu0 0.0
    %288 = vmatpush1.msra.mxu0 %v264
    %289 = vmatprep.subr.mxu0 0.0
    %290 = vmatpush1.msra.mxu0 %v265
    %291 = vmatprep.subr.mxu0 0.0
    %292 = vmatpush1.msra.mxu0 %v266
    %293 = vmatprep.subr.mxu0 0.0
    %294 = vmatpush1.msra.mxu0 0.0
    %295 = vmatprep.subr.mxu0 0.0
    %296 = vmatpush1.msra.mxu0 0.0
    %297 = vmatprep.subr.mxu0 0.0
    %298 = vmatpush1.msra.mxu0 0.0
    %299 = vmatprep.subr.mxu0 0.0
    %300 = vmatpush1.msra.mxu0 0.0
    %301 = vmatprep.subr.mxu0 0.0
    %302 = vmatpush1.msra.mxu0 0.0
    %303 = vmatprep.subr.mxu0 0.0
    %304 = vmatpush1.msra.mxu0 0.0
    %305 = vmatprep.subr.mxu0 0.0
    %306 = vmatpush1.msra.mxu0 0.0
    %307 = vmatprep.subr.mxu0 0.0
    %308 = vmatpush1.msra.mxu0 0.0
    %309 = vmatprep.subr.mxu0 0.0
    %310 = vmatpush1.msra.mxu0 0.0
    %311 = vmatprep.subr.mxu0 0.0
    %312 = vmatpush1.msra.mxu0 0.0
    %313 = vmatprep.subr.mxu0 0.0
    %314 = vmatpush1.msra.mxu0 0.0
    %315 = vmatprep.subr.mxu0 0.0
    %316 = vmatpush1.msra.mxu0 0.0
    %317 = vmatprep.subr.mxu0 0.0
    %318 = vmatpush1.msra.mxu0 0.0
    %319 = vmatprep.subr.mxu0 0.0
    %320 = vmatpush1.msra.mxu0 0.0
    %321 = vmatprep.subr.mxu0 0.0
    %322 = vmatpush1.msra.mxu0 0.0
    %323 = vmatprep.subr.mxu0 0.0
    %324 = vmatpush1.msra.mxu0 0.0
    %325 = vmatprep.subr.mxu0 0.0
    %326 = vmatpush1.msra.mxu0 0.0
    %327 = vmatprep.subr.mxu0 0.0
    %328 = vmatpush1.msra.mxu0 0.0
    %329 = vmatprep.subr.mxu0 0.0
    %330 = vmatpush1.msra.mxu0 0.0
    %331 = vmatprep.subr.mxu0 0.0
    %332 = vmatpush1.msra.mxu0 0.0
    %333 = vmatprep.subr.mxu0 0.0
    %334 = vmatpush1.msra.mxu0 0.0
    %335 = vmatprep.subr.mxu0 0.0
    %336 = vmatpush1.msra.mxu0 0.0
    %337 = vmatprep.subr.mxu0 0.0
    %338 = vmatpush1.msra.mxu0 0.0
    %339 = vmatprep.subr.mxu0 0.0
    %340 = vmatpush1.msra.mxu0 0.0
    %341 = vmatprep.mubr.f32.mxu0 0.0
    %342 = vmatmul.mubr.f32.gmra.mrb[0].mxu0 %v275
    %v343 = vpop.f32.mrb[0].mxu0
    %v344 = vadd.f32 %v272, %v343
    %v345 = vpop.f32.mrb[0].mxu0
    %346 = vdwg.mxu0
    %v347 = vsub.f32 0.0, %v344
    %v348 = vmul.f32 %v347, 1.442695
    %v349 = vpow.pop %v348
    %v350 = vadd.f32 %v349, 1.0
    %v351 = vrcp.pop %v350
    %352 = vst [vmem:[%s8] sm:$0xff] %v351
    // Predicated region
    $region46: #{_gan_infer.1} parent=1 // pred_check
      _
    $region47: #{_gan_infer.1} parent=1 // pred_check_branch
      %354 = sbr.rel (0) target = $region49
    $region48: #{_gan_infer.1} parent=1 // pred_region
      _
    $region49: #{_gan_infer.1} parent=1 // pred_fallthru
      _
    // Predicated region
    $region50: #{_gan_infer.1} parent=1 // pred_check
      _
    $region51: #{_gan_infer.1} parent=1 // pred_check_branch
      %356 = sbr.rel (0) target = $region53
    $region52: #{_gan_infer.1} parent=1 // pred_region
      _
    $region53: #{_gan_infer.1} parent=1 // pred_fallthru
      _
    %357 = vsyncpa [#allocation3], 1
    %358 = vsyncpa [#allocation5], 1

</llo_original>
